<compile_context>
chip_gen: v6e
topology: v6e:2x2x1
jax: 0.10.0
libtpu: 0.0.40
codegen_flags: <defaults>
</compile_context>

<pallas_src>
import functools

import jax
import jax.numpy as jnp
from jax.experimental import pallas as pl
from jax.experimental.pallas import tpu as pltpu


_VMEM_DATA_BUDGET = 28 << 20     # input double-buffers + f32 temps
_MAX_TILE_HBM_BYTES = 8 << 20    # per input per grid step


def _round_up(x, m):
    return ((x + m - 1) // m) * m


def _default_num_cores():
    """2 on dual-TensorCore chips (v7x, v4 megacore), else 1."""
    try:
        kind = jax.devices()[0].device_kind.lower()
    except Exception:
        return 1
    return 2 if ("v7" in kind or "v4" in kind) else 1


def _hinge_kernel(e1_ref, e2_ref, lab_ref, out_ref, acc_ref, *,
                  margin, n, block_n, tiles_per_core, acc_rows, folds):
    c = pl.program_id(0)
    i = pl.program_id(1)

    @pl.when(i == 0)
    def _():
        acc_ref[...] = jnp.zeros_like(acc_ref)

    d1 = e1_ref[...].astype(jnp.float32)
    d2 = e2_ref[...].astype(jnp.float32)
    diff = d1 - d2
    dist = jnp.sum(diff * diff, axis=1, keepdims=True)            # (block_n, 1)
    hinge = jnp.maximum(dist - margin, 0.0)
    weight = 1.0 - lab_ref[...].astype(jnp.float32)               # (block_n, 1)

    # Mask the ragged tail and any fully out-of-range tile (clamped index_map
    # re-reads a valid tile; the mask zeroes it).  Explicit where() also kills
    # any NaN/Inf coming from garbage rows of the edge block.
    tile_idx = c * tiles_per_core + i
    row0 = tile_idx * block_n
    rows = row0 + jax.lax.broadcasted_iota(jnp.int32, (block_n, 1), 0)
    contrib = jnp.where(rows < n, weight * hinge, 0.0)             # (block_n, 1)

    # Elementwise (VPU-only) accumulation into a vector accumulator; the
    # single cross-sublane reduce happens in the per-core epilogue.
    for f in range(folds):
        acc_ref[...] += contrib[f * acc_rows:(f + 1) * acc_rows, :]

    @pl.when(i == pl.num_programs(1) - 1)
    def _():
        # One lane-dense (1, 1, 128) store per core; wrapper reads lane 0.
        out_ref[...] = jnp.full(out_ref.shape, jnp.sum(acc_ref[...]),
                                dtype=jnp.float32)


def hinge_loss(embeddings1, embeddings2, labels, margin, *,
               block_n=None, num_cores=None):
    """Pallas TPU implementation of HingeLoss.forward. Returns a scalar f32."""
    n, d = embeddings1.shape
    itemsize = jnp.dtype(embeddings1.dtype).itemsize
    labels2d = labels.astype(jnp.float32).reshape(n, 1)   # tiny, no HBM cost

    if num_cores is None:
        num_cores = _default_num_cores()

    padded_d = _round_up(d, 128)                # lane-padded row width in VMEM
    if block_n is None:
        # 2 inputs x 2 pipeline buffers at the padded width + ~2 f32 temps.
        per_row_vmem = padded_d * (4 * itemsize + 8)
        bn_vmem = max(8, _VMEM_DATA_BUDGET // per_row_vmem)
        bn_hbm = max(8, _MAX_TILE_HBM_BYTES // (itemsize * d))
        block_n = min(bn_vmem, bn_hbm)
    block_n = max(8, (block_n // 8) * 8)
    block_n = min(block_n, max(8, (n // 8) * 8))   # never (much) larger than N

    if block_n >= 1024:
        block_n = (block_n // 1024) * 1024
        acc_rows = 1024
    else:
        acc_rows = block_n
    folds = block_n // acc_rows

    n_tiles = pl.cdiv(n, block_n)
    num_cores = max(1, min(num_cores, n_tiles))
    tiles_per_core = pl.cdiv(n_tiles, num_cores)
    last_tile = n_tiles - 1

    def tile_of(c, i):
        # Clamp so the DMA of "extra" tiles on the last core stays in bounds;
        # the kernel masks them out by global row index.
        return jnp.minimum(c * tiles_per_core + i, last_tile)

    emb_spec = pl.BlockSpec((block_n, d), lambda c, i: (tile_of(c, i), 0))
    lab_spec = pl.BlockSpec((block_n, 1), lambda c, i: (tile_of(c, i), 0))

    vmem_limit = int(min(max(
        4 * block_n * padded_d * itemsize          # 2 inputs x 2 buffers
        + 2 * block_n * padded_d * 4               # f32 temporaries
        + (4 << 20),                               # labels, acc, output, slack
        32 << 20), 48 << 20))

    kernel = functools.partial(
        _hinge_kernel, margin=float(margin), n=n, block_n=block_n,
        tiles_per_core=tiles_per_core, acc_rows=acc_rows, folds=folds)

    out = pl.pallas_call(
        kernel,
        out_shape=jax.ShapeDtypeStruct((num_cores, 1, 128), jnp.float32),
        grid_spec=pltpu.PrefetchScalarGridSpec(
            num_scalar_prefetch=0,
            grid=(num_cores, tiles_per_core),
            in_specs=[emb_spec, emb_spec, lab_spec],
            out_specs=pl.BlockSpec((1, 1, 128), lambda c, i: (c, 0, 0)),
            scratch_shapes=[pltpu.VMEM((acc_rows, 1), jnp.float32)],
        ),
        compiler_params=pltpu.CompilerParams(
            dimension_semantics=("parallel", "arbitrary"),
            vmem_limit_bytes=vmem_limit,
        ),
    )(embeddings1, embeddings2, labels2d)

    total = jnp.sum(out[:, 0, 0])                  # per-core partial sums
    return total / jnp.float32(n)


def hinge_loss_ref(embeddings1, embeddings2, labels, margin):
    e1 = embeddings1.astype(jnp.float32)
    e2 = embeddings2.astype(jnp.float32)
    distances = jnp.sum((e1 - e2) ** 2, axis=1)
    return jnp.mean(
        (1.0 - labels.astype(jnp.float32)) * jnp.maximum(distances - margin, 0.0)
    )


if __name__ == "__main__":
    key = jax.random.PRNGKey(0)
    ks = jax.random.split(key, 12)
    margin = 1.0

    # Case 1: D < 128 (small-embedding use) -- row layout, no transpose.
    N, D = 8, 32
    e1 = jax.random.normal(ks[0], (N, D), dtype=jnp.float32)
    e2 = jax.random.normal(ks[1], (N, D), dtype=jnp.float32)
    lab = jax.random.bernoulli(ks[2], 0.5, (N,)).astype(jnp.float32)
    loss = jax.block_until_ready(hinge_loss(e1, e2, lab, margin))
    ref = hinge_loss_ref(e1, e2, lab, margin)
    assert jnp.allclose(loss, ref, rtol=1e-5, atol=1e-5), (loss, ref)

    # Case 2: D a multiple of 128.
    N2, D2 = 24, 256
    e1b = jax.random.normal(ks[3], (N2, D2), dtype=jnp.float32)
    e2b = jax.random.normal(ks[4], (N2, D2), dtype=jnp.float32)
    labb = jax.random.bernoulli(ks[5], 0.5, (N2,)).astype(jnp.float32)
    lossb = jax.block_until_ready(hinge_loss(e1b, e2b, labb, margin))
    refb = hinge_loss_ref(e1b, e2b, labb, margin)
    assert jnp.allclose(lossb, refb, rtol=1e-5, atol=1e-5), (lossb, refb)

    # Case 3: ragged N and non-128 D -> in-kernel tail masking (no padding).
    N3, D3 = 50, 96
    e1c = jax.random.normal(ks[6], (N3, D3), dtype=jnp.float32)
    e2c = jax.random.normal(ks[7], (N3, D3), dtype=jnp.float32)
    labc = jax.random.bernoulli(ks[8], 0.5, (N3,)).astype(jnp.float32)
    lossc = jax.block_until_ready(hinge_loss(e1c, e2c, labc, margin))
    refc = hinge_loss_ref(e1c, e2c, labc, margin)
    assert jnp.allclose(lossc, refc, rtol=1e-5, atol=1e-5), (lossc, refc)

    # Case 4: multi-tile sweep with forced 2-way core split (exercises the
    # clamped index_map + per-core partial sums), bf16 inputs.
    N4, D4 = 300, 64
    e1d = jax.random.normal(ks[9], (N4, D4), dtype=jnp.float32).astype(jnp.bfloat16)
    e2d = jax.random.normal(ks[10], (N4, D4), dtype=jnp.float32).astype(jnp.bfloat16)
    labd = jax.random.bernoulli(ks[11], 0.5, (N4,)).astype(jnp.float32)
    lossd = jax.block_until_ready(
        hinge_loss(e1d, e2d, labd, margin, block_n=64, num_cores=2))
    refd = hinge_loss_ref(e1d, e2d, labd, margin)
    assert jnp.allclose(lossd, refd, rtol=1e-4, atol=1e-4), (lossd, refd)

    print("KERNEL_OK")
</pallas_src>

<mosaic_0001>
module attributes {stable_mosaic.version = 11 : i64} {
  func.func @_hinge_kernel(%arg0: i32, %arg1: i32, %arg2: memref<8x32xf32, #tpu.memory_space<vmem>>, %arg3: memref<8x32xf32, #tpu.memory_space<vmem>>, %arg4: memref<8x1xf32, #tpu.memory_space<vmem>>, %arg5: memref<1x1x128xf32, #tpu.memory_space<vmem>>, %arg6: memref<8x1xf32, #tpu.memory_space<vmem>>) attributes {dimension_semantics = [#tpu.dimension_semantics<parallel>, #tpu.dimension_semantics<arbitrary>], iteration_bounds = array<i64: 1, 1>, scalar_prefetch = 0 : i64, scratch_operands = 1 : i64, tpu.core_type = #tpu.core_type<tc>, window_params = [{transform_indices = @transform_0, window_bounds = array<i64: 8, 32>}, {transform_indices = @transform_1, window_bounds = array<i64: 8, 32>}, {transform_indices = @transform_2, window_bounds = array<i64: 8, 1>}, {transform_indices = @transform_3, window_bounds = array<i64: 1, 1, 128>}]} {
    %c0_i32 = arith.constant 0 : i32
    %0 = arith.cmpi eq, %arg1, %c0_i32 : i32
    %1 = arith.extui %0 : i1 to i32
    %c0_i32_0 = arith.constant 0 : i32
    %2 = arith.cmpi ne, %1, %c0_i32_0 : i32
    scf.if %2 {
      %cst_17 = arith.constant 0.000000e+00 : f32
      %33 = vector.broadcast %cst_17 : f32 to vector<8x1xf32>
      %c0_18 = arith.constant 0 : index
      %c0_19 = arith.constant 0 : index
      %34 = vector.load %arg6[%c0_18, %c0_19] : memref<8x1xf32, #tpu.memory_space<vmem>>, vector<8x1xf32>
      tpu.vector_store %arg6[%c0_18, %c0_19], %33 {strides = array<i32>} : memref<8x1xf32, #tpu.memory_space<vmem>>, vector<8x1xf32>,
    } else {
    }
    %c0 = arith.constant 0 : index
    %c0_1 = arith.constant 0 : index
    %3 = vector.load %arg2[%c0, %c0_1] : memref<8x32xf32, #tpu.memory_space<vmem>>, vector<8x32xf32>
    %c0_2 = arith.constant 0 : index
    %c0_3 = arith.constant 0 : index
    %4 = vector.load %arg3[%c0_2, %c0_3] : memref<8x32xf32, #tpu.memory_space<vmem>>, vector<8x32xf32>
    %5 = arith.subf %3, %4 : vector<8x32xf32>
    %6 = arith.mulf %5, %5 : vector<8x32xf32>
    %cst = arith.constant dense<0.000000e+00> : vector<8xf32>
    %7 = vector.multi_reduction <add>, %6, %cst [1] : vector<8x32xf32> to vector<8xf32>
    %8 = vector.shape_cast %7 : vector<8xf32> to vector<8x1xf32>
    %cst_4 = arith.constant 1.000000e+00 : f32
    %9 = vector.broadcast %cst_4 : f32 to vector<8x1xf32>
    %10 = arith.subf %8, %9 : vector<8x1xf32>
    %cst_5 = arith.constant 0.000000e+00 : f32
    %11 = vector.broadcast %cst_5 : f32 to vector<8x1xf32>
    %12 = arith.maximumf %10, %11 : vector<8x1xf32>
    %c0_6 = arith.constant 0 : index
    %c0_7 = arith.constant 0 : index
    %13 = vector.load %arg4[%c0_6, %c0_7] : memref<8x1xf32, #tpu.memory_space<vmem>>, vector<8x1xf32>
    %cst_8 = arith.constant 1.000000e+00 : f32
    %14 = vector.broadcast %cst_8 : f32 to vector<8x1xf32>
    %15 = arith.subf %14, %13 : vector<8x1xf32>
    %c1_i32 = arith.constant 1 : i32
    %16 = arith.muli %arg0, %c1_i32 : i32
    %17 = arith.addi %16, %arg1 : i32
    %c8_i32 = arith.constant 8 : i32
    %18 = arith.muli %17, %c8_i32 : i32
    %19 = tpu.iota {dimensions = array<i32: 0>} : vector<8x1xi32>
    %20 = vector.broadcast %18 : i32 to vector<8x1xi32>
    %21 = arith.addi %20, %19 : vector<8x1xi32>
    %c8_i32_9 = arith.constant 8 : i32
    %22 = vector.broadcast %c8_i32_9 : i32 to vector<8x1xi32>
    %23 = arith.cmpi slt, %21, %22 : vector<8x1xi32>
    %24 = arith.mulf %15, %12 : vector<8x1xf32>
    %cst_10 = arith.constant 0.000000e+00 : f32
    %25 = vector.broadcast %cst_10 : f32 to vector<8x1xf32>
    %26 = arith.select %23, %24, %25 : vector<8x1xi1>, vector<8x1xf32>
    %c0_11 = arith.constant 0 : index
    %c0_12 = arith.constant 0 : index
    %27 = vector.load %arg6[%c0_11, %c0_12] : memref<8x1xf32, #tpu.memory_space<vmem>>, vector<8x1xf32>
    %28 = arith.addf %27, %26 : vector<8x1xf32>
    %c0_13 = arith.constant 0 : index
    %c0_14 = arith.constant 0 : index
    %29 = vector.load %arg6[%c0_13, %c0_14] : memref<8x1xf32, #tpu.memory_space<vmem>>, vector<8x1xf32>
    tpu.vector_store %arg6[%c0_13, %c0_14], %28 {strides = array<i32>} : memref<8x1xf32, #tpu.memory_space<vmem>>, vector<8x1xf32>,
    %c0_i32_15 = arith.constant 0 : i32
    %30 = arith.cmpi eq, %arg1, %c0_i32_15 : i32
    %31 = arith.extui %30 : i1 to i32
    %c0_i32_16 = arith.constant 0 : i32
    %32 = arith.cmpi ne, %31, %c0_i32_16 : i32
    scf.if %32 {
      %c0_17 = arith.constant 0 : index
      %c0_18 = arith.constant 0 : index
      %33 = vector.load %arg6[%c0_17, %c0_18] : memref<8x1xf32, #tpu.memory_space<vmem>>, vector<8x1xf32>
      %34 = vector.shape_cast %33 : vector<8x1xf32> to vector<1x8x1xf32>
      %cst_19 = arith.constant dense<0.000000e+00> : vector<1xf32>
      %35 = vector.multi_reduction <add>, %34, %cst_19 [1, 2] : vector<1x8x1xf32> to vector<1xf32>
      %36 = vector.shape_cast %35 : vector<1xf32> to vector<1x1x1xf32>
      %37 = vector.extract %36[0, 0, 0] : f32 from vector<1x1x1xf32>
      %38 = vector.broadcast %37 : f32 to vector<1x1x128xf32>
      %c0_20 = arith.constant 0 : index
      %c0_21 = arith.constant 0 : index
      %c0_22 = arith.constant 0 : index
      %39 = vector.load %arg5[%c0_20, %c0_21, %c0_22] : memref<1x1x128xf32, #tpu.memory_space<vmem>>, vector<1x1x128xf32>
      tpu.vector_store %arg5[%c0_20, %c0_21, %c0_22], %38 {strides = array<i32>} : memref<1x1x128xf32, #tpu.memory_space<vmem>>, vector<1x1x128xf32>,
    } else {
    }
    return
  }
  func.func @transform_0(%arg0: i32, %arg1: i32) -> (i32, i32) {
    %c1_i32 = arith.constant 1 : i32
    %0 = arith.muli %arg0, %c1_i32 : i32
    %1 = arith.addi %0, %arg1 : i32
    %c0_i32 = arith.constant 0 : i32
    %2 = arith.minsi %1, %c0_i32 : i32
    %c0_i32_0 = arith.constant 0 : i32
    %c0_i32_1 = arith.constant 0 : i32
    return %2, %c0_i32_0 : i32, i32
  }
  func.func @transform_1(%arg0: i32, %arg1: i32) -> (i32, i32) {
    %c1_i32 = arith.constant 1 : i32
    %0 = arith.muli %arg0, %c1_i32 : i32
    %1 = arith.addi %0, %arg1 : i32
    %c0_i32 = arith.constant 0 : i32
    %2 = arith.minsi %1, %c0_i32 : i32
    %c0_i32_0 = arith.constant 0 : i32
    %c0_i32_1 = arith.constant 0 : i32
    return %2, %c0_i32_0 : i32, i32
  }
  func.func @transform_2(%arg0: i32, %arg1: i32) -> (i32, i32) {
    %c1_i32 = arith.constant 1 : i32
    %0 = arith.muli %arg0, %c1_i32 : i32
    %1 = arith.addi %0, %arg1 : i32
    %c0_i32 = arith.constant 0 : i32
    %2 = arith.minsi %1, %c0_i32 : i32
    %c0_i32_0 = arith.constant 0 : i32
    %c0_i32_1 = arith.constant 0 : i32
    return %2, %c0_i32_0 : i32, i32
  }
  func.func @transform_3(%arg0: i32, %arg1: i32) -> (i32, i32, i32) {
    %c0_i32 = arith.constant 0 : i32
    %c0_i32_0 = arith.constant 0 : i32
    %c0_i32_1 = arith.constant 0 : i32
    return %arg0, %c0_i32, %c0_i32_0 : i32, i32, i32
  }
}

</mosaic_0001>

<llo_original>
// kernel: tpu_custom_call.1
$region0: #{tpu_custom_call.1}
  #allocation0 [shape = 'u32[]', space=smem, size = 0x4, offset = 0x4, fixed_abs, tag = 'smem constant byte address 0x4 - core index']
  #allocation1 [shape = 'u32[144,128]{1,0:T(1,128)}', space=vmem, size = 0x12000, scoped, tag = 'internal scratch']
  #allocation2 [shape = 'f32[8,1]{1,0:T(8,128)}', space=vmem, size = 0x1000, scoped, tag = 'scratch operand']
  %s0 = inlined_call_operand.vmem [shape: f32[8,32], index: 0, kind: input, shape index: {}]
  %s1 = inlined_call_operand.hbm [shape: f32[8,32], index: 1, kind: input, shape index: {}]
  %s2 = inlined_call_operand.vmem [shape: f32[8,1], index: 2, kind: input, shape index: {}]
  %s3 = inlined_call_operand.hbm [shape: f32[1,1,128], index: 3, kind: output, shape index: {}]
  %s4 = sld [smem:[#allocation0]]
  $region34: #{tpu_custom_call.1} parent=0
    _
  %s6 = ssub.s32 1, %s4
  %s7 = scalar_select 0, %s6, %s4
  $region1: #{tpu_custom_call.1} parent=0
    #allocation3 [shape = 'u8[4096]{0}', space=vmem, size = 0x1000, scoped, tag = 'input window, operand 1, single buffered']
    #allocation4 [shape = 's32[1]{0}', space=sflag, size = 0x4, scoped, tag = 'scoped memory for tpu_custom_call.1']
    #allocation5 [shape = 's32[1]{0}', space=sflag, size = 0x4, scoped, tag = 'scoped memory for tpu_custom_call.1']
    #allocation6 [shape = 'u8[512]{0}', space=vmem, size = 0x400, scoped, tag = 'output window, operand 0, single buffered']
    %8 = vsyncpa [#allocation4], 0
    %9 = vsyncpa [#allocation5], 0
    // Predicated region
    $region2: #{tpu_custom_call.1} parent=1 // pred_check
      _
    $region3: #{tpu_custom_call.1} parent=1 // pred_check_branch
      %11 = sbr.rel (0) target = $region5
    $region4: #{tpu_custom_call.1} parent=1 // pred_region
      %s12 = sadd.s32 0, 0
      %p13 = scmp.lt.s32.totalorder %s12, 0
      %s14 = scalar_select %p13, %s12, 0
      %p15 = scmp.lt.s32.totalorder %s14, 0
      %s16 = scalar_select %p15, %s14, 0
      %s17 = smul.addr %s16, 8
      %s18 = scalar_lea.vmem %s0, %s17
      %s19 = sadd.s32 0, 0
      %p20 = scmp.lt.s32.totalorder %s19, 0
      %s21 = scalar_select %p20, %s19, 0
    $region5: #{tpu_custom_call.1} parent=1 // pred_fallthru
      _
    // Predicated region
    $region6: #{tpu_custom_call.1} parent=1 // pred_check
      _
    $region7: #{tpu_custom_call.1} parent=1 // pred_check_branch
      %23 = sbr.rel (0) target = $region9
    $region8: #{tpu_custom_call.1} parent=1 // pred_region
      %s24 = sadd.s32 0, 0
      %p25 = scmp.lt.s32.totalorder %s24, 0
      %s26 = scalar_select %p25, %s24, 0
      %s28 = ssub.s32 128, 128
      %29 = vsyncadd [#allocation4], %s28
      %s30 = smul.addr %s26, 128
      %s31 = scalar_lea.hbm %s1, %s30
      %s33 = sshll.u32 [#allocation3], 4
      %s34 = int_to_ptr.vmem [resolvable:$true] %s33
      %36 = dma.hbm_to_vmem [thread:$0]  %s31, 128, %s34, [#allocation4]
    $region9: #{tpu_custom_call.1} parent=1 // pred_fallthru
      _
    // Predicated region
    $region10: #{tpu_custom_call.1} parent=1 // pred_check
      _
    $region11: #{tpu_custom_call.1} parent=1 // pred_check_branch
      %38 = sbr.rel (0) target = $region13
    $region12: #{tpu_custom_call.1} parent=1 // pred_region
      %s39 = sadd.s32 0, 0
      %p40 = scmp.lt.s32.totalorder %s39, 0
      %s41 = scalar_select %p40, %s39, 0
      %p42 = scmp.lt.s32.totalorder %s41, 0
      %s43 = scalar_select %p42, %s41, 0
      %s44 = smul.addr %s43, 8
      %s45 = scalar_lea.vmem %s2, %s44
      %s46 = sadd.s32 0, 0
      %p47 = scmp.lt.s32.totalorder %s46, 0
      %s48 = scalar_select %p47, %s46, 0
    $region13: #{tpu_custom_call.1} parent=1 // pred_fallthru
      _
    // Predicated region
    $region14: #{tpu_custom_call.1} parent=1 // pred_check
      _
    $region15: #{tpu_custom_call.1} parent=1 // pred_check_branch
      %50 = sbr.rel (0) target = $region17
    $region16: #{tpu_custom_call.1} parent=1 // pred_region
      %51 = dma.done [#allocation4], 128
    $region17: #{tpu_custom_call.1} parent=1 // pred_fallthru
      _
    %s52 = sadd.s32 0, 0
    %p53 = scmp.lt.s32.totalorder %s52, 0
    %s54 = scalar_select %p53, %s52, 0
    %p55 = scmp.lt.s32.totalorder %s54, 0
    %s56 = scalar_select %p55, %s54, 0
    %s57 = smul.addr %s56, 8
    %s58 = scalar_lea.vmem %s0, %s57
    %s59 = sadd.s32 0, 0
    %p60 = scmp.lt.s32.totalorder %s59, 0
    %s61 = scalar_select %p60, %s59, 0
    %p62 = scmp.lt.s32.totalorder %s61, 0
    %s63 = scalar_select %p62, %s61, 0
    %s64 = smul.addr %s63, 8
    %s65 = scalar_lea.vmem %s2, %s64
    %s66 = sadd.s32 0, 0
    %p67 = scmp.lt.s32.totalorder %s66, 0
    %s68 = scalar_select %p67, %s66, 0
    %p69 = scmp.lt.s32.totalorder %s68, 0
    %s70 = scalar_select %p69, %s68, 0
    %s71 = smul.addr %s70, 8
    %s72 = scalar_lea.vmem %s0, %s71
    %s73 = sadd.s32 0, 0
    %p74 = scmp.lt.s32.totalorder %s73, 0
    %s75 = scalar_select %p74, %s73, 0
    %s76 = sadd.s32 0, 0
    %p77 = scmp.lt.s32.totalorder %s76, 0
    %s78 = scalar_select %p77, %s76, 0
    %s79 = sadd.s32 0, 0
    %p80 = scmp.lt.s32.totalorder %s79, 0
    %s81 = scalar_select %p80, %s79, 0
    %p82 = scmp.lt.s32.totalorder %s81, 0
    %s83 = scalar_select %p82, %s81, 0
    %s84 = smul.addr %s83, 8
    %s85 = scalar_lea.vmem %s2, %s84
    %s86 = sadd.s32 0, 0
    %p87 = scmp.lt.s32.totalorder %s86, 0
    %s88 = scalar_select %p87, %s86, 0
    %p89 = scmp.eq.s32.totalorder 0, 0
    // Predicated region
    $region18: #{tpu_custom_call.1} parent=1 // pred_check
      %p90 = pneg %p89
    $region19: #{tpu_custom_call.1} parent=1 // pred_check_branch
      %92 = sbr.rel (%p90) target = $region21
    $region20: #{tpu_custom_call.1} parent=1 // pred_region
      %vm93 = vcmask 7168
      %94 = vst.msk [vmem:[#allocation2] sm:$0xff] %vm93, 0.0
    $region21: #{tpu_custom_call.1} parent=1 // pred_fallthru
      _
    %v95 = vld [vmem:[%s72] sm:$0xff]
    %v96 = vld [vmem:[#allocation3] sm:$0xff]
    %v97 = vsub.f32 %v95, %v96
    %v98 = vmul.f32 %v97, %v97
    %vm99 = vcmask 261120
    %v100 = vsel %vm99, %v98, 0.0
    %101 = vadd.xlane.f32.xlu0 %v100
    %v102 = vpop.xlane.xlu0 %101
    %v103 = vsub.f32 %v102, 1.0
    %v104 = vmax.f32 %v103, 0.0
    %v105 = vld [vmem:[%s85] sm:$0xff]
    %v106 = vsub.f32 1.0, %v105
    %s107 = sadd.s32 0, 0
    %s108 = smul.u32 %s107, 8
    %v109 = vlaneseq
    %v110 = vshrl.u32 %v109, 7
    %v111 = vstv %s108
    %v112 = vadd.s32 %v111, %v110
    %vm113 = vcmp.lt.s32.totalorder %v112, 8
    %v114 = vmul.f32 %v106, %v104
    %v115 = vsel %vm113, %v114, 0.0
    %v116 = vld [vmem:[#allocation2] sm:$0xff]
    %v117 = vadd.f32 %v116, %v115
    %vm118 = vcmask 7168
    %119 = vst.msk [vmem:[#allocation2] sm:$0xff] %vm118, %v117
    // Predicated region
    $region22: #{tpu_custom_call.1} parent=1 // pred_check
      %p120 = pneg %p89
    $region23: #{tpu_custom_call.1} parent=1 // pred_check_branch
      %122 = sbr.rel (%p120) target = $region25
    $region24: #{tpu_custom_call.1} parent=1 // pred_region
      %v123 = vld [vmem:[#allocation2] sm:$0xff]
      %v124 = vsel %vm118, %v123, 0.0
      %125 = vadd.xlane.f32.xlu0 %v124
      %v126 = vpop.xlane.xlu0 %125
      %v127 = vrot.slane %v126, 4
      %v128 = vadd.f32 %v126, %v127
      %v129 = vrot.slane %v128, 2
      %v130 = vadd.f32 %v128, %v129
      %v131 = vrot.slane %v130, 1
      %v132 = vadd.f32 %v130, %v131
      %s133 = vtos %v132
      %v134 = vstv %s133
      %135 = vst [vmem:[#allocation6] sm:$0x1] %v134
    $region25: #{tpu_custom_call.1} parent=1 // pred_fallthru
      _
    // Predicated region
    $region26: #{tpu_custom_call.1} parent=1 // pred_check
      _
    $region27: #{tpu_custom_call.1} parent=1 // pred_check_branch
      %137 = sbr.rel (0) target = $region29
    $region28: #{tpu_custom_call.1} parent=1 // pred_region
      %s139 = ssub.s32 16, 16
      %140 = vsyncadd [#allocation5], %s139
      %s142 = sshll.u32 [#allocation6], 4
      %s143 = int_to_ptr.vmem [resolvable:$true] %s142
      %145 = dma.vmem_to_hbm [thread:$0]  %s143, 16, %s3, [#allocation5]
    $region29: #{tpu_custom_call.1} parent=1 // pred_fallthru
      _
    // Predicated region
    $region30: #{tpu_custom_call.1} parent=1 // pred_check
      _
    $region31: #{tpu_custom_call.1} parent=1 // pred_check_branch
      %147 = sbr.rel (0) target = $region33
    $region32: #{tpu_custom_call.1} parent=1 // pred_region
      %148 = dma.done [#allocation5], 16
    $region33: #{tpu_custom_call.1} parent=1 // pred_fallthru
      _
    %149 = vsyncpa [#allocation4], 1
    %150 = vsyncpa [#allocation5], 1

</llo_original>
